<compile_context>
chip_gen: v5e
topology: v5e:2x2
jax: 0.10.0
libtpu: 0.0.40
codegen_flags: <defaults>
</compile_context>

<pallas_src>
import functools
import math

import jax
import jax.numpy as jnp
from jax import lax
from jax.experimental import pallas as pl
from jax.experimental.pallas import tpu as pltpu


# ---------------------------------------------------------------------------
# In-kernel helpers
# ---------------------------------------------------------------------------

def _layernorm(x, a, b):
    # Annotated-Transformer LayerNorm: a * (x - mean) / (std_unbiased + eps) + b
    D = x.shape[-1]
    mean = jnp.mean(x, axis=-1, keepdims=True)
    xc = x - mean
    var_unbiased = jnp.sum(xc * xc, axis=-1, keepdims=True) * jnp.float32(1.0 / (D - 1))
    std = jnp.sqrt(var_unbiased)
    return a * xc * pl.reciprocal(std + jnp.float32(1e-6), approx=False) + b


def _mha_core(q, k, v, bias, h):
    # q: (Tq, D), k/v: (Tk, D), bias: (Tq, Tk) additive mask (0 / -1e9).
    # Heads are processed with a static loop inside the kernel (no HBM round trips,
    # no materialized transposes); context is re-merged lane-dense to (Tq, D).
    Tq, D = q.shape
    dk = D // h
    inv_sqrt_dk = jnp.float32(1.0 / math.sqrt(dk))
    # contract on the last dim of both operands  => q_h @ k_h^T without a transpose op
    dn = (((1,), (1,)), ((), ()))
    ctx = []
    for i in range(h):
        sl = slice(i * dk, (i + 1) * dk)
        s = lax.dot_general(q[:, sl], k[:, sl], dn,
                            preferred_element_type=jnp.float32) * inv_sqrt_dk
        s = s + bias
        s = s - jnp.max(s, axis=-1, keepdims=True)
        p = jnp.exp(s)
        p = p * pl.reciprocal(jnp.sum(p, axis=-1, keepdims=True), approx=False)
        ctx.append(jnp.dot(p, v[:, sl], preferred_element_type=jnp.float32))
    return jnp.concatenate(ctx, axis=-1)  # (Tq, D)


# ---------------------------------------------------------------------------
# Fused sublayer kernels
# ---------------------------------------------------------------------------

def _self_attn_sublayer_kernel(x_ref, lna_ref, lnb_ref, wqkv_ref, bqkv_ref,
                               wo_ref, bo_ref, bias_ref, o_ref, *, h):
    # x + self_attn(norm(x), norm(x), norm(x))       (dropout = identity)
    x = x_ref[0]                                     # (T, D)
    D = x.shape[-1]
    nx = _layernorm(x, lna_ref[...], lnb_ref[...])
    qkv = jnp.dot(nx, wqkv_ref[...], preferred_element_type=jnp.float32) + bqkv_ref[...]
    q = qkv[:, :D]
    k = qkv[:, D:2 * D]
    v = qkv[:, 2 * D:]
    ctx = _mha_core(q, k, v, bias_ref[0], h)
    out = jnp.dot(ctx, wo_ref[...], preferred_element_type=jnp.float32) + bo_ref[...]
    o_ref[0] = x + out


def _src_attn_sublayer_kernel(x_ref, mem_ref, lna_ref, lnb_ref, wq_ref, bq_ref,
                              wkv_ref, bkv_ref, wo_ref, bo_ref, bias_ref, o_ref, *, h):
    # x + src_attn(norm(x), memory, memory)          (dropout = identity)
    x = x_ref[0]                                     # (Tq, D)
    mem = mem_ref[0]                                 # (Tk, D)
    D = x.shape[-1]
    nx = _layernorm(x, lna_ref[...], lnb_ref[...])
    q = jnp.dot(nx, wq_ref[...], preferred_element_type=jnp.float32) + bq_ref[...]
    kv = jnp.dot(mem, wkv_ref[...], preferred_element_type=jnp.float32) + bkv_ref[...]
    k = kv[:, :D]
    v = kv[:, D:]
    ctx = _mha_core(q, k, v, bias_ref[0], h)
    out = jnp.dot(ctx, wo_ref[...], preferred_element_type=jnp.float32) + bo_ref[...]
    o_ref[0] = x + out


def _ffn_sublayer_kernel(x_ref, lna_ref, lnb_ref, w1_ref, b1_ref, w2_ref, b2_ref, o_ref):
    # x + w2(relu(w1(norm(x))))                      (dropout = identity)
    x = x_ref[...]                                   # (tm, D)
    nx = _layernorm(x, lna_ref[...], lnb_ref[...])
    hdn = jnp.dot(nx, w1_ref[...], preferred_element_type=jnp.float32) + b1_ref[...]
    hdn = jnp.maximum(hdn, jnp.float32(0.0))
    o_ref[...] = x + jnp.dot(hdn, w2_ref[...], preferred_element_type=jnp.float32) + b2_ref[...]


def _final_ln_kernel(x_ref, a_ref, b_ref, o_ref):
    o_ref[...] = _layernorm(x_ref[...], a_ref[...], b_ref[...])


# ---------------------------------------------------------------------------
# pallas_call wrappers
# ---------------------------------------------------------------------------

def _pick_row_tile(M, target=512):
    # biggest row tile <= target that divides M and keeps the (8,128) rule happy
    if M <= target:
        return M
    for tm in range(target, 7, -8):
        if M % tm == 0:
            return tm
    return M


def self_attn_sublayer(x, p, bias, h):
    B, T, D = x.shape
    return pl.pallas_call(
        functools.partial(_self_attn_sublayer_kernel, h=h),
        out_shape=jax.ShapeDtypeStruct((B, T, D), jnp.float32),
        grid=(B,),
        in_specs=[
            pl.BlockSpec((1, T, D), lambda b: (b, 0, 0)),
            pl.BlockSpec((1, D), lambda b: (0, 0)),
            pl.BlockSpec((1, D), lambda b: (0, 0)),
            pl.BlockSpec((D, 3 * D), lambda b: (0, 0)),   # fused QKV weight (resident)
            pl.BlockSpec((1, 3 * D), lambda b: (0, 0)),
            pl.BlockSpec((D, D), lambda b: (0, 0)),
            pl.BlockSpec((1, D), lambda b: (0, 0)),
            pl.BlockSpec((1, T, T), lambda b: (b, 0, 0)),
        ],
        out_specs=pl.BlockSpec((1, T, D), lambda b: (b, 0, 0)),
        compiler_params=pltpu.CompilerParams(dimension_semantics=("parallel",)),
    )(x, p["ln_a"], p["ln_b"], p["wqkv"], p["bqkv"], p["wo"], p["bo"], bias)


def src_attn_sublayer(x, memory, p, bias, h):
    B, Tq, D = x.shape
    Tk = memory.shape[1]
    return pl.pallas_call(
        functools.partial(_src_attn_sublayer_kernel, h=h),
        out_shape=jax.ShapeDtypeStruct((B, Tq, D), jnp.float32),
        grid=(B,),
        in_specs=[
            pl.BlockSpec((1, Tq, D), lambda b: (b, 0, 0)),
            pl.BlockSpec((1, Tk, D), lambda b: (b, 0, 0)),
            pl.BlockSpec((1, D), lambda b: (0, 0)),
            pl.BlockSpec((1, D), lambda b: (0, 0)),
            pl.BlockSpec((D, D), lambda b: (0, 0)),
            pl.BlockSpec((1, D), lambda b: (0, 0)),
            pl.BlockSpec((D, 2 * D), lambda b: (0, 0)),   # fused KV weight (resident)
            pl.BlockSpec((1, 2 * D), lambda b: (0, 0)),
            pl.BlockSpec((D, D), lambda b: (0, 0)),
            pl.BlockSpec((1, D), lambda b: (0, 0)),
            pl.BlockSpec((1, Tq, Tk), lambda b: (b, 0, 0)),
        ],
        out_specs=pl.BlockSpec((1, Tq, D), lambda b: (b, 0, 0)),
        compiler_params=pltpu.CompilerParams(dimension_semantics=("parallel",)),
    )(x, memory, p["ln_a"], p["ln_b"], p["wq"], p["bq"], p["wkv"], p["bkv"],
      p["wo"], p["bo"], bias)


def ffn_sublayer(x, p):
    B, T, D = x.shape
    Dff = p["w1t"].shape[1]
    M = B * T
    tm = _pick_row_tile(M)
    out = pl.pallas_call(
        _ffn_sublayer_kernel,
        out_shape=jax.ShapeDtypeStruct((M, D), jnp.float32),
        grid=(M // tm,),
        in_specs=[
            pl.BlockSpec((tm, D), lambda i: (i, 0)),
            pl.BlockSpec((1, D), lambda i: (0, 0)),
            pl.BlockSpec((1, D), lambda i: (0, 0)),
            pl.BlockSpec((D, Dff), lambda i: (0, 0)),     # weights stay resident
            pl.BlockSpec((1, Dff), lambda i: (0, 0)),
            pl.BlockSpec((Dff, D), lambda i: (0, 0)),
            pl.BlockSpec((1, D), lambda i: (0, 0)),
        ],
        out_specs=pl.BlockSpec((tm, D), lambda i: (i, 0)),
        compiler_params=pltpu.CompilerParams(dimension_semantics=("parallel",)),
    )(x.reshape(M, D), p["ln_a"], p["ln_b"], p["w1t"], p["b1"], p["w2t"], p["b2"])
    return out.reshape(B, T, D)


def final_layernorm(x, a2, b2):
    B, T, D = x.shape
    M = B * T
    tm = _pick_row_tile(M)
    out = pl.pallas_call(
        _final_ln_kernel,
        out_shape=jax.ShapeDtypeStruct((M, D), jnp.float32),
        grid=(M // tm,),
        in_specs=[
            pl.BlockSpec((tm, D), lambda i: (i, 0)),
            pl.BlockSpec((1, D), lambda i: (0, 0)),
            pl.BlockSpec((1, D), lambda i: (0, 0)),
        ],
        out_specs=pl.BlockSpec((tm, D), lambda i: (i, 0)),
        compiler_params=pltpu.CompilerParams(dimension_semantics=("parallel",)),
    )(x.reshape(M, D), a2, b2)
    return out.reshape(B, T, D)


# ---------------------------------------------------------------------------
# Glue: decoder layer, full decoder
# ---------------------------------------------------------------------------

def _mask_to_bias(mask, Tq):
    # PyTorch-side: mask.unsqueeze(1) broadcast against (B,h,Tq,Tk) scores, where(mask==0,-1e9).
    # Precompute the additive f32 bias once (shared across heads & layers).
    B = mask.shape[0]
    Tk = mask.shape[-1]
    m = jnp.broadcast_to(mask, (B, Tq, Tk))
    return jnp.where(m == 0, jnp.float32(-1e9), jnp.float32(0.0))


def decoder_layer(lp, x, memory, src_bias, tgt_bias, h):
    x = self_attn_sublayer(x, lp["self_attn"], tgt_bias, h)
    x = src_attn_sublayer(x, memory, lp["src_attn"], src_bias, h)
    x = ffn_sublayer(x, lp["ffn"])
    return x


def decoder_forward(params, x, memory, src_mask, tgt_mask, h):
    Tq = x.shape[1]
    tgt_bias = _mask_to_bias(tgt_mask, Tq)
    src_bias = _mask_to_bias(src_mask, Tq)
    for lp in params["layers"]:
        x = decoder_layer(lp, x, memory, src_bias, tgt_bias, h)
    return final_layernorm(x, params["norm_a"], params["norm_b"])


# ---------------------------------------------------------------------------
# Deterministic parameter construction (PyTorch nn.Linear layout, then fused/
# pre-transposed ONCE so kernels contract on the stored layout).
# ---------------------------------------------------------------------------

def _init_linear(key, d_out, d_in):
    scale = 1.0 / math.sqrt(d_in)
    w = jax.random.uniform(key, (d_out, d_in), jnp.float32, -scale, scale)
    b = jnp.zeros((d_out,), jnp.float32)
    return w, b


def _init_self_attn(key, d_model):
    ks = jax.random.split(key, 4)
    wq, bq = _init_linear(ks[0], d_model, d_model)
    wk, bk = _init_linear(ks[1], d_model, d_model)
    wv, bv = _init_linear(ks[2], d_model, d_model)
    wo, bo = _init_linear(ks[3], d_model, d_model)
    return dict(
        wqkv=jnp.concatenate([wq.T, wk.T, wv.T], axis=1),        # (D, 3D)
        bqkv=jnp.concatenate([bq, bk, bv]).reshape(1, 3 * d_model),
        wo=wo.T, bo=bo.reshape(1, d_model),
        ln_a=jnp.ones((1, d_model), jnp.float32),
        ln_b=jnp.zeros((1, d_model), jnp.float32),
    )


def _init_src_attn(key, d_model):
    ks = jax.random.split(key, 4)
    wq, bq = _init_linear(ks[0], d_model, d_model)
    wk, bk = _init_linear(ks[1], d_model, d_model)
    wv, bv = _init_linear(ks[2], d_model, d_model)
    wo, bo = _init_linear(ks[3], d_model, d_model)
    return dict(
        wq=wq.T, bq=bq.reshape(1, d_model),
        wkv=jnp.concatenate([wk.T, wv.T], axis=1),               # (D, 2D)
        bkv=jnp.concatenate([bk, bv]).reshape(1, 2 * d_model),
        wo=wo.T, bo=bo.reshape(1, d_model),
        ln_a=jnp.ones((1, d_model), jnp.float32),
        ln_b=jnp.zeros((1, d_model), jnp.float32),
    )


def init_decoder_params(key, N, d_model, d_ff):
    layers = []
    for _ in range(N):
        k0, k1, k2, k3, key = jax.random.split(key, 5)
        w1, b1 = _init_linear(k2, d_ff, d_model)
        w2, b2 = _init_linear(k3, d_model, d_ff)
        layers.append(dict(
            self_attn=_init_self_attn(k0, d_model),
            src_attn=_init_src_attn(k1, d_model),
            ffn=dict(
                w1t=w1.T, b1=b1.reshape(1, d_ff),
                w2t=w2.T, b2=b2.reshape(1, d_model),
                ln_a=jnp.ones((1, d_model), jnp.float32),
                ln_b=jnp.zeros((1, d_model), jnp.float32),
            ),
        ))
    return dict(
        layers=layers,
        norm_a=jnp.ones((1, d_model), jnp.float32),
        norm_b=jnp.zeros((1, d_model), jnp.float32),
    )


# ---------------------------------------------------------------------------

if __name__ == "__main__":
    B, T_TGT, T_SRC = 2, 8, 8
    D_MODEL, N_HEADS, D_FF, N_LAYERS = 32, 4, 64, 2

    key = jax.random.PRNGKey(0)
    k_x, k_mem, k_p = jax.random.split(key, 3)

    x = jax.random.normal(k_x, (B, T_TGT, D_MODEL), jnp.float32)
    memory = jax.random.normal(k_mem, (B, T_SRC, D_MODEL), jnp.float32)

    # tgt_mask: causal (subsequent) mask, shape (B, T_tgt, T_tgt)
    tgt_mask = jnp.broadcast_to(
        jnp.tril(jnp.ones((T_TGT, T_TGT), jnp.int32)), (B, T_TGT, T_TGT)
    )
    # src_mask: all-visible source mask, shape (B, 1, T_src)
    src_mask = jnp.ones((B, 1, T_SRC), jnp.int32)

    params = init_decoder_params(k_p, N_LAYERS, D_MODEL, D_FF)

    out = decoder_forward(params, x, memory, src_mask, tgt_mask, N_HEADS)
    out = jax.block_until_ready(out)
    assert out.shape == (B, T_TGT, D_MODEL)
    assert bool(jnp.all(jnp.isfinite(out)))
    # TODO(synk): for production shapes, cast matmul inputs to bf16 (f32 accum) and tile Tq/Dff.
    print("KERNEL_OK")
</pallas_src>

<mosaic_0001>
module attributes {stable_mosaic.version = 11 : i64} {
  func.func @_self_attn_sublayer_kernel(%arg0: i32, %arg1: memref<1x8x32xf32, #tpu.memory_space<vmem>>, %arg2: memref<1x32xf32, #tpu.memory_space<vmem>>, %arg3: memref<1x32xf32, #tpu.memory_space<vmem>>, %arg4: memref<32x96xf32, #tpu.memory_space<vmem>>, %arg5: memref<1x96xf32, #tpu.memory_space<vmem>>, %arg6: memref<32x32xf32, #tpu.memory_space<vmem>>, %arg7: memref<1x32xf32, #tpu.memory_space<vmem>>, %arg8: memref<1x8x8xf32, #tpu.memory_space<vmem>>, %arg9: memref<1x8x32xf32, #tpu.memory_space<vmem>>) attributes {dimension_semantics = [#tpu.dimension_semantics<parallel>], iteration_bounds = array<i64: 2>, scalar_prefetch = 0 : i64, scratch_operands = 0 : i64, tpu.core_type = #tpu.core_type<tc>, window_params = [{transform_indices = @transform_0, window_bounds = array<i64: 1, 8, 32>}, {pipeline_mode = #tpu.pipeline_mode<synchronous>, transform_indices = @transform_1, window_bounds = array<i64: 1, 32>}, {pipeline_mode = #tpu.pipeline_mode<synchronous>, transform_indices = @transform_2, window_bounds = array<i64: 1, 32>}, {pipeline_mode = #tpu.pipeline_mode<synchronous>, transform_indices = @transform_3, window_bounds = array<i64: 32, 96>}, {pipeline_mode = #tpu.pipeline_mode<synchronous>, transform_indices = @transform_4, window_bounds = array<i64: 1, 96>}, {pipeline_mode = #tpu.pipeline_mode<synchronous>, transform_indices = @transform_5, window_bounds = array<i64: 32, 32>}, {pipeline_mode = #tpu.pipeline_mode<synchronous>, transform_indices = @transform_6, window_bounds = array<i64: 1, 32>}, {transform_indices = @transform_7, window_bounds = array<i64: 1, 8, 8>}, {transform_indices = @transform_8, window_bounds = array<i64: 1, 8, 32>}]} {
    %c0 = arith.constant 0 : index
    %c0_0 = arith.constant 0 : index
    %c0_1 = arith.constant 0 : index
    %0 = vector.load %arg1[%c0, %c0_0, %c0_1] : memref<1x8x32xf32, #tpu.memory_space<vmem>>, vector<1x8x32xf32>
    %1 = vector.shape_cast %0 : vector<1x8x32xf32> to vector<8x32xf32>
    %c0_2 = arith.constant 0 : index
    %c0_3 = arith.constant 0 : index
    %2 = vector.load %arg2[%c0_2, %c0_3] : memref<1x32xf32, #tpu.memory_space<vmem>>, vector<1x32xf32>
    %c0_4 = arith.constant 0 : index
    %c0_5 = arith.constant 0 : index
    %3 = vector.load %arg3[%c0_4, %c0_5] : memref<1x32xf32, #tpu.memory_space<vmem>>, vector<1x32xf32>
    %cst = arith.constant dense<0.000000e+00> : vector<8xf32>
    %4 = vector.multi_reduction <add>, %1, %cst [1] : vector<8x32xf32> to vector<8xf32>
    %5 = vector.shape_cast %4 : vector<8xf32> to vector<8x1xf32>
    %cst_6 = arith.constant 3.200000e+01 : f32
    %6 = vector.broadcast %cst_6 : f32 to vector<8x1xf32>
    %7 = arith.divf %5, %6 : vector<8x1xf32>
    %8 = vector.broadcast %7 : vector<8x1xf32> to vector<8x32xf32>
    %9 = arith.subf %1, %8 : vector<8x32xf32>
    %10 = arith.mulf %9, %9 : vector<8x32xf32>
    %cst_7 = arith.constant dense<0.000000e+00> : vector<8xf32>
    %11 = vector.multi_reduction <add>, %10, %cst_7 [1] : vector<8x32xf32> to vector<8xf32>
    %12 = vector.shape_cast %11 : vector<8xf32> to vector<8x1xf32>
    %cst_8 = arith.constant 0.0322580636 : f32
    %13 = vector.broadcast %cst_8 : f32 to vector<8x1xf32>
    %14 = arith.mulf %12, %13 : vector<8x1xf32>
    %15 = math.sqrt %14 : vector<8x1xf32>
    %16 = vector.broadcast %2 : vector<1x32xf32> to vector<8x32xf32>
    %17 = arith.mulf %16, %9 : vector<8x32xf32>
    %cst_9 = arith.constant 9.99999997E-7 : f32
    %18 = vector.broadcast %cst_9 : f32 to vector<8x1xf32>
    %19 = arith.addf %15, %18 : vector<8x1xf32>
    %20 = tpu.reciprocal %19 : vector<8x1xf32> -> vector<8x1xf32>
    %21 = vector.broadcast %20 : vector<8x1xf32> to vector<8x32xf32>
    %22 = arith.mulf %17, %21 : vector<8x32xf32>
    %23 = vector.broadcast %3 : vector<1x32xf32> to vector<8x32xf32>
    %24 = arith.addf %22, %23 : vector<8x32xf32>
    %c0_10 = arith.constant 0 : index
    %c0_11 = arith.constant 0 : index
    %25 = vector.load %arg4[%c0_10, %c0_11] : memref<32x96xf32, #tpu.memory_space<vmem>>, vector<32x96xf32>
    %cst_12 = arith.constant dense<0.000000e+00> : vector<8x96xf32>
    %26 = tpu.matmul %24, %25, %cst_12 {dimension_numbers = #tpu.dot_dimension_numbers<[1], [0], [0], [1], [0, 0, 1, 1], [], []>} : vector<8x32xf32>, vector<32x96xf32>, vector<8x96xf32> -> vector<8x96xf32>
    %c0_13 = arith.constant 0 : index
    %c0_14 = arith.constant 0 : index
    %27 = vector.load %arg5[%c0_13, %c0_14] : memref<1x96xf32, #tpu.memory_space<vmem>>, vector<1x96xf32>
    %28 = vector.broadcast %27 : vector<1x96xf32> to vector<8x96xf32>
    %29 = arith.addf %26, %28 : vector<8x96xf32>
    %30 = vector.extract_strided_slice %29 {offsets = [0, 0], sizes = [8, 32], strides = [1, 1]} : vector<8x96xf32> to vector<8x32xf32>
    %31 = vector.extract_strided_slice %29 {offsets = [0, 32], sizes = [8, 32], strides = [1, 1]} : vector<8x96xf32> to vector<8x32xf32>
    %32 = vector.extract_strided_slice %29 {offsets = [0, 64], sizes = [8, 32], strides = [1, 1]} : vector<8x96xf32> to vector<8x32xf32>
    %c0_15 = arith.constant 0 : index
    %c0_16 = arith.constant 0 : index
    %c0_17 = arith.constant 0 : index
    %33 = vector.load %arg8[%c0_15, %c0_16, %c0_17] : memref<1x8x8xf32, #tpu.memory_space<vmem>>, vector<1x8x8xf32>
    %34 = vector.shape_cast %33 : vector<1x8x8xf32> to vector<8x8xf32>
    %35 = vector.extract_strided_slice %30 {offsets = [0, 0], sizes = [8, 8], strides = [1, 1]} : vector<8x32xf32> to vector<8x8xf32>
    %36 = vector.extract_strided_slice %31 {offsets = [0, 0], sizes = [8, 8], strides = [1, 1]} : vector<8x32xf32> to vector<8x8xf32>
    %cst_18 = arith.constant dense<0.000000e+00> : vector<8x8xf32>
    %37 = tpu.matmul %35, %36, %cst_18 {dimension_numbers = #tpu.dot_dimension_numbers<[1], [1], [0], [0], [0, 0, 1, 0], [], []>} : vector<8x8xf32>, vector<8x8xf32>, vector<8x8xf32> -> vector<8x8xf32>
    %cst_19 = arith.constant 0.353553385 : f32
    %38 = vector.broadcast %cst_19 : f32 to vector<8x8xf32>
    %39 = arith.mulf %37, %38 : vector<8x8xf32>
    %40 = arith.addf %39, %34 : vector<8x8xf32>
    %cst_20 = arith.constant dense<0xFF800000> : vector<8xf32>
    %41 = vector.multi_reduction <maximumf>, %40, %cst_20 [1] : vector<8x8xf32> to vector<8xf32>
    %42 = vector.shape_cast %41 : vector<8xf32> to vector<8x1xf32>
    %43 = vector.broadcast %42 : vector<8x1xf32> to vector<8x8xf32>
    %44 = arith.subf %40, %43 : vector<8x8xf32>
    %45 = math.exp %44 : vector<8x8xf32>
    %cst_21 = arith.constant dense<0.000000e+00> : vector<8xf32>
    %46 = vector.multi_reduction <add>, %45, %cst_21 [1] : vector<8x8xf32> to vector<8xf32>
    %47 = vector.shape_cast %46 : vector<8xf32> to vector<8x1xf32>
    %48 = tpu.reciprocal %47 : vector<8x1xf32> -> vector<8x1xf32>
    %49 = vector.broadcast %48 : vector<8x1xf32> to vector<8x8xf32>
    %50 = arith.mulf %45, %49 : vector<8x8xf32>
    %51 = vector.extract_strided_slice %32 {offsets = [0, 0], sizes = [8, 8], strides = [1, 1]} : vector<8x32xf32> to vector<8x8xf32>
    %cst_22 = arith.constant dense<0.000000e+00> : vector<8x8xf32>
    %52 = tpu.matmul %50, %51, %cst_22 {dimension_numbers = #tpu.dot_dimension_numbers<[1], [0], [0], [1], [0, 0, 1, 1], [], []>} : vector<8x8xf32>, vector<8x8xf32>, vector<8x8xf32> -> vector<8x8xf32>
    %53 = vector.extract_strided_slice %30 {offsets = [0, 8], sizes = [8, 8], strides = [1, 1]} : vector<8x32xf32> to vector<8x8xf32>
    %54 = vector.extract_strided_slice %31 {offsets = [0, 8], sizes = [8, 8], strides = [1, 1]} : vector<8x32xf32> to vector<8x8xf32>
    %cst_23 = arith.constant dense<0.000000e+00> : vector<8x8xf32>
    %55 = tpu.matmul %53, %54, %cst_23 {dimension_numbers = #tpu.dot_dimension_numbers<[1], [1], [0], [0], [0, 0, 1, 0], [], []>} : vector<8x8xf32>, vector<8x8xf32>, vector<8x8xf32> -> vector<8x8xf32>
    %cst_24 = arith.constant 0.353553385 : f32
    %56 = vector.broadcast %cst_24 : f32 to vector<8x8xf32>
    %57 = arith.mulf %55, %56 : vector<8x8xf32>
    %58 = arith.addf %57, %34 : vector<8x8xf32>
    %cst_25 = arith.constant dense<0xFF800000> : vector<8xf32>
    %59 = vector.multi_reduction <maximumf>, %58, %cst_25 [1] : vector<8x8xf32> to vector<8xf32>
    %60 = vector.shape_cast %59 : vector<8xf32> to vector<8x1xf32>
    %61 = vector.broadcast %60 : vector<8x1xf32> to vector<8x8xf32>
    %62 = arith.subf %58, %61 : vector<8x8xf32>
    %63 = math.exp %62 : vector<8x8xf32>
    %cst_26 = arith.constant dense<0.000000e+00> : vector<8xf32>
    %64 = vector.multi_reduction <add>, %63, %cst_26 [1] : vector<8x8xf32> to vector<8xf32>
    %65 = vector.shape_cast %64 : vector<8xf32> to vector<8x1xf32>
    %66 = tpu.reciprocal %65 : vector<8x1xf32> -> vector<8x1xf32>
    %67 = vector.broadcast %66 : vector<8x1xf32> to vector<8x8xf32>
    %68 = arith.mulf %63, %67 : vector<8x8xf32>
    %69 = vector.extract_strided_slice %32 {offsets = [0, 8], sizes = [8, 8], strides = [1, 1]} : vector<8x32xf32> to vector<8x8xf32>
    %cst_27 = arith.constant dense<0.000000e+00> : vector<8x8xf32>
    %70 = tpu.matmul %68, %69, %cst_27 {dimension_numbers = #tpu.dot_dimension_numbers<[1], [0], [0], [1], [0, 0, 1, 1], [], []>} : vector<8x8xf32>, vector<8x8xf32>, vector<8x8xf32> -> vector<8x8xf32>
    %71 = vector.extract_strided_slice %30 {offsets = [0, 16], sizes = [8, 8], strides = [1, 1]} : vector<8x32xf32> to vector<8x8xf32>
    %72 = vector.extract_strided_slice %31 {offsets = [0, 16], sizes = [8, 8], strides = [1, 1]} : vector<8x32xf32> to vector<8x8xf32>
    %cst_28 = arith.constant dense<0.000000e+00> : vector<8x8xf32>
    %73 = tpu.matmul %71, %72, %cst_28 {dimension_numbers = #tpu.dot_dimension_numbers<[1], [1], [0], [0], [0, 0, 1, 0], [], []>} : vector<8x8xf32>, vector<8x8xf32>, vector<8x8xf32> -> vector<8x8xf32>
    %cst_29 = arith.constant 0.353553385 : f32
    %74 = vector.broadcast %cst_29 : f32 to vector<8x8xf32>
    %75 = arith.mulf %73, %74 : vector<8x8xf32>
    %76 = arith.addf %75, %34 : vector<8x8xf32>
    %cst_30 = arith.constant dense<0xFF800000> : vector<8xf32>
    %77 = vector.multi_reduction <maximumf>, %76, %cst_30 [1] : vector<8x8xf32> to vector<8xf32>
    %78 = vector.shape_cast %77 : vector<8xf32> to vector<8x1xf32>
    %79 = vector.broadcast %78 : vector<8x1xf32> to vector<8x8xf32>
    %80 = arith.subf %76, %79 : vector<8x8xf32>
    %81 = math.exp %80 : vector<8x8xf32>
    %cst_31 = arith.constant dense<0.000000e+00> : vector<8xf32>
    %82 = vector.multi_reduction <add>, %81, %cst_31 [1] : vector<8x8xf32> to vector<8xf32>
    %83 = vector.shape_cast %82 : vector<8xf32> to vector<8x1xf32>
    %84 = tpu.reciprocal %83 : vector<8x1xf32> -> vector<8x1xf32>
    %85 = vector.broadcast %84 : vector<8x1xf32> to vector<8x8xf32>
    %86 = arith.mulf %81, %85 : vector<8x8xf32>
    %87 = vector.extract_strided_slice %32 {offsets = [0, 16], sizes = [8, 8], strides = [1, 1]} : vector<8x32xf32> to vector<8x8xf32>
    %cst_32 = arith.constant dense<0.000000e+00> : vector<8x8xf32>
    %88 = tpu.matmul %86, %87, %cst_32 {dimension_numbers = #tpu.dot_dimension_numbers<[1], [0], [0], [1], [0, 0, 1, 1], [], []>} : vector<8x8xf32>, vector<8x8xf32>, vector<8x8xf32> -> vector<8x8xf32>
    %89 = vector.extract_strided_slice %30 {offsets = [0, 24], sizes = [8, 8], strides = [1, 1]} : vector<8x32xf32> to vector<8x8xf32>
    %90 = vector.extract_strided_slice %31 {offsets = [0, 24], sizes = [8, 8], strides = [1, 1]} : vector<8x32xf32> to vector<8x8xf32>
    %cst_33 = arith.constant dense<0.000000e+00> : vector<8x8xf32>
    %91 = tpu.matmul %89, %90, %cst_33 {dimension_numbers = #tpu.dot_dimension_numbers<[1], [1], [0], [0], [0, 0, 1, 0], [], []>} : vector<8x8xf32>, vector<8x8xf32>, vector<8x8xf32> -> vector<8x8xf32>
    %cst_34 = arith.constant 0.353553385 : f32
    %92 = vector.broadcast %cst_34 : f32 to vector<8x8xf32>
    %93 = arith.mulf %91, %92 : vector<8x8xf32>
    %94 = arith.addf %93, %34 : vector<8x8xf32>
    %cst_35 = arith.constant dense<0xFF800000> : vector<8xf32>
    %95 = vector.multi_reduction <maximumf>, %94, %cst_35 [1] : vector<8x8xf32> to vector<8xf32>
    %96 = vector.shape_cast %95 : vector<8xf32> to vector<8x1xf32>
    %97 = vector.broadcast %96 : vector<8x1xf32> to vector<8x8xf32>
    %98 = arith.subf %94, %97 : vector<8x8xf32>
    %99 = math.exp %98 : vector<8x8xf32>
    %cst_36 = arith.constant dense<0.000000e+00> : vector<8xf32>
    %100 = vector.multi_reduction <add>, %99, %cst_36 [1] : vector<8x8xf32> to vector<8xf32>
    %101 = vector.shape_cast %100 : vector<8xf32> to vector<8x1xf32>
    %102 = tpu.reciprocal %101 : vector<8x1xf32> -> vector<8x1xf32>
    %103 = vector.broadcast %102 : vector<8x1xf32> to vector<8x8xf32>
    %104 = arith.mulf %99, %103 : vector<8x8xf32>
    %105 = vector.extract_strided_slice %32 {offsets = [0, 24], sizes = [8, 8], strides = [1, 1]} : vector<8x32xf32> to vector<8x8xf32>
    %cst_37 = arith.constant dense<0.000000e+00> : vector<8x8xf32>
    %106 = tpu.matmul %104, %105, %cst_37 {dimension_numbers = #tpu.dot_dimension_numbers<[1], [0], [0], [1], [0, 0, 1, 1], [], []>} : vector<8x8xf32>, vector<8x8xf32>, vector<8x8xf32> -> vector<8x8xf32>
    %107 = tpu.concatenate %52, %70, %88, %106 in 1 : vector<8x8xf32>, vector<8x8xf32>, vector<8x8xf32>, vector<8x8xf32> -> vector<8x32xf32>
    %c0_38 = arith.constant 0 : index
    %c0_39 = arith.constant 0 : index
    %108 = vector.load %arg6[%c0_38, %c0_39] : memref<32x32xf32, #tpu.memory_space<vmem>>, vector<32x32xf32>
    %cst_40 = arith.constant dense<0.000000e+00> : vector<8x32xf32>
    %109 = tpu.matmul %107, %108, %cst_40 {dimension_numbers = #tpu.dot_dimension_numbers<[1], [0], [0], [1], [0, 0, 1, 1], [], []>} : vector<8x32xf32>, vector<32x32xf32>, vector<8x32xf32> -> vector<8x32xf32>
    %c0_41 = arith.constant 0 : index
    %c0_42 = arith.constant 0 : index
    %110 = vector.load %arg7[%c0_41, %c0_42] : memref<1x32xf32, #tpu.memory_space<vmem>>, vector<1x32xf32>
    %111 = vector.broadcast %110 : vector<1x32xf32> to vector<8x32xf32>
    %112 = arith.addf %109, %111 : vector<8x32xf32>
    %113 = arith.addf %1, %112 : vector<8x32xf32>
    %c0_43 = arith.constant 0 : index
    %c0_44 = arith.constant 0 : index
    %c0_45 = arith.constant 0 : index
    %114 = vector.load %arg9[%c0_43, %c0_44, %c0_45] : memref<1x8x32xf32, #tpu.memory_space<vmem>>, vector<1x8x32xf32>
    %115 = vector.shape_cast %114 : vector<1x8x32xf32> to vector<8x32xf32>
    %116 = vector.shape_cast %113 : vector<8x32xf32> to vector<1x8x32xf32>
    tpu.vector_store %arg9[%c0_43, %c0_44, %c0_45], %116 {strides = array<i32>} : memref<1x8x32xf32, #tpu.memory_space<vmem>>, vector<1x8x32xf32>,
    return
  }
  func.func @transform_0(%arg0: i32) -> (i32, i32, i32) {
    %c0_i32 = arith.constant 0 : i32
    %c0_i32_0 = arith.constant 0 : i32
    %c0_i32_1 = arith.constant 0 : i32
    return %arg0, %c0_i32, %c0_i32_0 : i32, i32, i32
  }
  func.func @transform_1(%arg0: i32) -> (i32, i32) {
    %c0_i32 = arith.constant 0 : i32
    %c0_i32_0 = arith.constant 0 : i32
    %c0_i32_1 = arith.constant 0 : i32
    return %c0_i32, %c0_i32_0 : i32, i32
  }
  func.func @transform_2(%arg0: i32) -> (i32, i32) {
    %c0_i32 = arith.constant 0 : i32
    %c0_i32_0 = arith.constant 0 : i32
    %c0_i32_1 = arith.constant 0 : i32
    return %c0_i32, %c0_i32_0 : i32, i32
  }
  func.func @transform_3(%arg0: i32) -> (i32, i32) {
    %c0_i32 = arith.constant 0 : i32
    %c0_i32_0 = arith.constant 0 : i32
    %c0_i32_1 = arith.constant 0 : i32
    return %c0_i32, %c0_i32_0 : i32, i32
  }
  func.func @transform_4(%arg0: i32) -> (i32, i32) {
    %c0_i32 = arith.constant 0 : i32
    %c0_i32_0 = arith.constant 0 : i32
    %c0_i32_1 = arith.constant 0 : i32
    return %c0_i32, %c0_i32_0 : i32, i32
  }
  func.func @transform_5(%arg0: i32) -> (i32, i32) {
    %c0_i32 = arith.constant 0 : i32
    %c0_i32_0 = arith.constant 0 : i32
    %c0_i32_1 = arith.constant 0 : i32
    return %c0_i32, %c0_i32_0 : i32, i32
  }
  func.func @transform_6(%arg0: i32) -> (i32, i32) {
    %c0_i32 = arith.constant 0 : i32
    %c0_i32_0 = arith.constant 0 : i32
    %c0_i32_1 = arith.constant 0 : i32
    return %c0_i32, %c0_i32_0 : i32, i32
  }
  func.func @transform_7(%arg0: i32) -> (i32, i32, i32) {
    %c0_i32 = arith.constant 0 : i32
    %c0_i32_0 = arith.constant 0 : i32
    %c0_i32_1 = arith.constant 0 : i32
    return %arg0, %c0_i32, %c0_i32_0 : i32, i32, i32
  }
  func.func @transform_8(%arg0: i32) -> (i32, i32, i32) {
    %c0_i32 = arith.constant 0 : i32
    %c0_i32_0 = arith.constant 0 : i32
    %c0_i32_1 = arith.constant 0 : i32
    return %arg0, %c0_i32, %c0_i32_0 : i32, i32, i32
  }
}

</mosaic_0001>

<llo_original>
// kernel: tpu_custom_call.1
$region0: #{tpu_custom_call.1}
  #allocation0 [shape = 'u32[]', space=smem, size = 0x4, offset = 0x4, fixed_abs, tag = 'smem constant byte address 0x4 - core index']
  #allocation1 [shape = 'u32[72,128]{1,0:T(1,128)}', space=vmem, size = 0x9000, scoped, tag = 'internal scratch']
  %s0 = inlined_call_operand.hbm [shape: f32[2,8,32], index: 0, kind: input, shape index: {}]
  %s1 = inlined_call_operand.hbm [shape: f32[1,32], index: 1, kind: input, shape index: {}]
  %s2 = inlined_call_operand.vmem [shape: f32[1,32], index: 2, kind: input, shape index: {}]
  %s3 = inlined_call_operand.hbm [shape: f32[32,96], index: 3, kind: input, shape index: {}]
  %s4 = inlined_call_operand.vmem [shape: f32[1,96], index: 4, kind: input, shape index: {}]
  %s5 = inlined_call_operand.hbm [shape: f32[32,32], index: 5, kind: input, shape index: {}]
  %s6 = inlined_call_operand.vmem [shape: f32[1,32], index: 6, kind: input, shape index: {}]
  %s7 = inlined_call_operand.hbm [shape: f32[2,8,8], index: 7, kind: input, shape index: {}]
  %s8 = inlined_call_operand.hbm [shape: f32[2,8,32], index: 8, kind: output, shape index: {}]
  %s9 = sld [smem:[#allocation0]]
  $region85: #{tpu_custom_call.1} parent=0
    _
  %s11 = ssub.s32 1, %s9
  %s12 = scalar_select 0, %s11, %s9
  $region1: #{tpu_custom_call.1} parent=0
    #allocation2 [shape = 'u8[8192]{0}', space=vmem, size = 0x2000, scoped, tag = 'input window, operand 0']
    #allocation3 [shape = 's32[2]{0}', space=sflag, size = 0x8, scoped, tag = 'scoped memory for tpu_custom_call.1']
    #allocation4 [shape = 's32[2]{0}', space=sflag, size = 0x8, scoped, tag = 'scoped memory for tpu_custom_call.1']
    #allocation5 [shape = 'u8[512]{0}', space=vmem, size = 0x400, scoped, tag = 'input window, operand 1, single buffered']
    #allocation6 [shape = 's32[1]{0}', space=sflag, size = 0x4, scoped, tag = 'scoped memory for tpu_custom_call.1']
    #allocation7 [shape = 'u8[16384]{0}', space=vmem, size = 0x4000, scoped, tag = 'input window, operand 3, single buffered']
    #allocation8 [shape = 'u8[16384]{0}', space=vmem, size = 0x4000, scoped, tag = 'input window, operand 5, single buffered']
    #allocation9 [shape = 's32[1]{0}', space=sflag, size = 0x4, scoped, tag = 'scoped memory for tpu_custom_call.1']
    #allocation10 [shape = 'u8[8192]{0}', space=vmem, size = 0x2000, scoped, tag = 'input window, operand 7']
    #allocation11 [shape = 'u8[8192]{0}', space=vmem, size = 0x2000, scoped, tag = 'output window, operand 0']
    %13 = vsyncpa [#allocation3], 0
    %s14 = scalar_lea.sflag [#allocation3], 1
    %15 = vsyncpa %s14, 0
    %16 = vsyncpa [#allocation6], 0
    %17 = vsyncpa [#allocation9], 0
    %18 = vsyncpa [#allocation4], 0
    %s19 = scalar_lea.sflag [#allocation4], 1
    %20 = vsyncpa %s19, 0
    loop: start=0, step=1, limit=4
    $region2: #{tpu_custom_call.1} parent=1 // loop_pre_header
      _
    $region3: #{tpu_custom_call.1} parent=1 // loop_header
      %s22 = sphi 0, %s26
      %p23 = scmp.ge.s32.totalorder %s22, 4
      %s32 = sphi 0, %s34
      %s35 = sphi 0, %s32
      %s36 = sphi 0, %s35
      %s52 = sphi 0, %s36
      %s56 = sphi 0, %s56
      %s58 = sphi 0, %s56
      %s59 = sphi 0, %s58
      %s73 = sphi 0, %s59
      %s77 = sphi 0, %s77
      %s79 = sphi 0, %s77
      %s80 = sphi 0, %s79
      %s94 = sphi 0, %s80
      %s98 = sphi 0, %s98
      %s100 = sphi 0, %s98
      %s101 = sphi 0, %s100
      %s115 = sphi 0, %s101
      %s119 = sphi 0, %s119
      %s121 = sphi 0, %s119
      %s122 = sphi 0, %s121
      %s136 = sphi 0, %s122
      %s140 = sphi 0, %s140
      %s142 = sphi 0, %s140
      %s143 = sphi 0, %s142
      %s157 = sphi 0, %s143
      %s161 = sphi 0, %s161
      %s163 = sphi 0, %s161
      %s164 = sphi 0, %s163
      %s178 = sphi 0, %s164
      %s184 = sphi 0, %s186
      %s187 = sphi 0, %s184
      %s188 = sphi 0, %s187
      %s204 = sphi 0, %s188
      %s210 = sphi 0, %s212
      %s213 = sphi 0, %s210
      %s214 = sphi 0, %s213
      %s230 = sphi 0, %s214
    $region4: #{tpu_custom_call.1} parent=1 // loop_header_branch
      %25 = sbr.rel (%p23) target = $region8
    $region5: #{tpu_custom_call.1} parent=1 // loop_body
      %s27 = ssub.s32 %s22, 1
      %s28 = ssub.s32 %s22, 2
      %s29 = sadd.s32 %s22, 1
      %s30 = ssub.s32 %s22, %s29
      %p31 = scmp.eq.s32.totalorder %s30, 0
      %s33 = sadd.s32 %s32, 1
      %s34 = scalar_select %p31, %s32, %s33
      %p37 = pneg %p31
      %p38 = scmp.eq.s32.totalorder %s22, 1
      %p39 = por %p37, %p38
      %p40 = scmp.ne.s32.totalorder %s32, %s35
      %p41 = scmp.eq.s32.totalorder %s22, 0
      %p42 = por %p40, %p41
      %p43 = scmp.ne.s32.totalorder %s32, %s35
      %p44 = scmp.eq.s32.totalorder %s27, 1
      %p45 = por %p43, %p44
      %p46 = scmp.ne.s32.totalorder %s35, %s36
      %p47 = scmp.eq.s32.totalorder %s27, 0
      %p48 = por %p46, %p47
      %p49 = scmp.ne.s32.totalorder %s35, %s36
      %p50 = scmp.eq.s32.totalorder %s28, 1
      %p51 = por %p49, %p50
      %p53 = scmp.ne.s32.totalorder %s36, %s52
      %p54 = scmp.eq.s32.totalorder %s28, 0
      %p55 = por %p53, %p54
      %s57 = sadd.s32 %s56, 1
      %p60 = scmp.eq.s32.totalorder %s22, 1
      %p61 = scmp.ne.s32.totalorder %s56, %s58
      %p62 = scmp.eq.s32.totalorder %s22, 0
      %p63 = por %p61, %p62
      %p64 = scmp.ne.s32.totalorder %s56, %s58
      %p65 = scmp.eq.s32.totalorder %s27, 1
      %p66 = por %p64, %p65
      %p67 = scmp.ne.s32.totalorder %s58, %s59
      %p68 = scmp.eq.s32.totalorder %s27, 0
      %p69 = por %p67, %p68
      %p70 = scmp.ne.s32.totalorder %s58, %s59
      %p71 = scmp.eq.s32.totalorder %s28, 1
      %p72 = por %p70, %p71
      %p74 = scmp.ne.s32.totalorder %s59, %s73
      %p75 = scmp.eq.s32.totalorder %s28, 0
      %p76 = por %p74, %p75
      %s78 = sadd.s32 %s77, 1
      %p81 = scmp.eq.s32.totalorder %s22, 1
      %p82 = scmp.ne.s32.totalorder %s77, %s79
      %p83 = scmp.eq.s32.totalorder %s22, 0
      %p84 = por %p82, %p83
      %p85 = scmp.ne.s32.totalorder %s77, %s79
      %p86 = scmp.eq.s32.totalorder %s27, 1
      %p87 = por %p85, %p86
      %p88 = scmp.ne.s32.totalorder %s79, %s80
      %p89 = scmp.eq.s32.totalorder %s27, 0
      %p90 = por %p88, %p89
      %p91 = scmp.ne.s32.totalorder %s79, %s80
      %p92 = scmp.eq.s32.totalorder %s28, 1
      %p93 = por %p91, %p92
      %p95 = scmp.ne.s32.totalorder %s80, %s94
      %p96 = scmp.eq.s32.totalorder %s28, 0
      %p97 = por %p95, %p96
      %s99 = sadd.s32 %s98, 1
      %p102 = scmp.eq.s32.totalorder %s22, 1
      %p103 = scmp.ne.s32.totalorder %s98, %s100
      %p104 = scmp.eq.s32.totalorder %s22, 0
      %p105 = por %p103, %p104
      %p106 = scmp.ne.s32.totalorder %s98, %s100
      %p107 = scmp.eq.s32.totalorder %s27, 1
      %p108 = por %p106, %p107
      %p109 = scmp.ne.s32.totalorder %s100, %s101
      %p110 = scmp.eq.s32.totalorder %s27, 0
      %p111 = por %p109, %p110
      %p112 = scmp.ne.s32.totalorder %s100, %s101
      %p113 = scmp.eq.s32.totalorder %s28, 1
      %p114 = por %p112, %p113
      %p116 = scmp.ne.s32.totalorder %s101, %s115
      %p117 = scmp.eq.s32.totalorder %s28, 0
      %p118 = por %p116, %p117
      %s120 = sadd.s32 %s119, 1
      %p123 = scmp.eq.s32.totalorder %s22, 1
      %p124 = scmp.ne.s32.totalorder %s119, %s121
      %p125 = scmp.eq.s32.totalorder %s22, 0
      %p126 = por %p124, %p125
      %p127 = scmp.ne.s32.totalorder %s119, %s121
      %p128 = scmp.eq.s32.totalorder %s27, 1
      %p129 = por %p127, %p128
      %p130 = scmp.ne.s32.totalorder %s121, %s122
      %p131 = scmp.eq.s32.totalorder %s27, 0
      %p132 = por %p130, %p131
      %p133 = scmp.ne.s32.totalorder %s121, %s122
      %p134 = scmp.eq.s32.totalorder %s28, 1
      %p135 = por %p133, %p134
      %p137 = scmp.ne.s32.totalorder %s122, %s136
      %p138 = scmp.eq.s32.totalorder %s28, 0
      %p139 = por %p137, %p138
      %s141 = sadd.s32 %s140, 1
      %p144 = scmp.eq.s32.totalorder %s22, 1
      %p145 = scmp.ne.s32.totalorder %s140, %s142
      %p146 = scmp.eq.s32.totalorder %s22, 0
      %p147 = por %p145, %p146
      %p148 = scmp.ne.s32.totalorder %s140, %s142
      %p149 = scmp.eq.s32.totalorder %s27, 1
      %p150 = por %p148, %p149
      %p151 = scmp.ne.s32.totalorder %s142, %s143
      %p152 = scmp.eq.s32.totalorder %s27, 0
      %p153 = por %p151, %p152
      %p154 = scmp.ne.s32.totalorder %s142, %s143
      %p155 = scmp.eq.s32.totalorder %s28, 1
      %p156 = por %p154, %p155
      %p158 = scmp.ne.s32.totalorder %s143, %s157
      %p159 = scmp.eq.s32.totalorder %s28, 0
      %p160 = por %p158, %p159
      %s162 = sadd.s32 %s161, 1
      %p165 = scmp.eq.s32.totalorder %s22, 1
      %p166 = scmp.ne.s32.totalorder %s161, %s163
      %p167 = scmp.eq.s32.totalorder %s22, 0
      %p168 = por %p166, %p167
      %p169 = scmp.ne.s32.totalorder %s161, %s163
      %p170 = scmp.eq.s32.totalorder %s27, 1
      %p171 = por %p169, %p170
      %p172 = scmp.ne.s32.totalorder %s163, %s164
      %p173 = scmp.eq.s32.totalorder %s27, 0
      %p174 = por %p172, %p173
      %p175 = scmp.ne.s32.totalorder %s163, %s164
      %p176 = scmp.eq.s32.totalorder %s28, 1
      %p177 = por %p175, %p176
      %p179 = scmp.ne.s32.totalorder %s164, %s178
      %p180 = scmp.eq.s32.totalorder %s28, 0
      %p181 = por %p179, %p180
      %s182 = ssub.s32 %s22, %s29
      %p183 = scmp.eq.s32.totalorder %s182, 0
      %s185 = sadd.s32 %s184, 1
      %s186 = scalar_select %p183, %s184, %s185
      %p189 = pneg %p183
      %p190 = scmp.eq.s32.totalorder %s22, 1
      %p191 = por %p189, %p190
      %p192 = scmp.ne.s32.totalorder %s184, %s187
      %p193 = scmp.eq.s32.totalorder %s22, 0
      %p194 = por %p192, %p193
      %p195 = scmp.ne.s32.totalorder %s184, %s187
      %p196 = scmp.eq.s32.totalorder %s27, 1
      %p197 = por %p195, %p196
      %p198 = scmp.ne.s32.totalorder %s187, %s188
      %p199 = scmp.eq.s32.totalorder %s27, 0
      %p200 = por %p198, %p199
      %p201 = scmp.ne.s32.totalorder %s187, %s188
      %p202 = scmp.eq.s32.totalorder %s28, 1
      %p203 = por %p201, %p202
      %p205 = scmp.ne.s32.totalorder %s188, %s204
      %p206 = scmp.eq.s32.totalorder %s28, 0
      %p207 = por %p205, %p206
      %s208 = ssub.s32 %s22, %s29
      %p209 = scmp.eq.s32.totalorder %s208, 0
      %s211 = sadd.s32 %s210, 1
      %s212 = scalar_select %p209, %s210, %s211
      %p215 = pneg %p209
      %p216 = scmp.eq.s32.totalorder %s22, 1
      %p217 = por %p215, %p216
      %p218 = scmp.ne.s32.totalorder %s210, %s213
      %p219 = scmp.eq.s32.totalorder %s22, 0
      %p220 = por %p218, %p219
      %p221 = scmp.ne.s32.totalorder %s210, %s213
      %p222 = scmp.eq.s32.totalorder %s27, 1
      %p223 = por %p221, %p222
      %p224 = scmp.ne.s32.totalorder %s213, %s214
      %p225 = scmp.eq.s32.totalorder %s27, 0
      %p226 = por %p224, %p225
      %p227 = scmp.ne.s32.totalorder %s213, %s214
      %p228 = scmp.eq.s32.totalorder %s28, 1
      %p229 = por %p227, %p228
      %p231 = scmp.ne.s32.totalorder %s214, %s230
      %p232 = scmp.eq.s32.totalorder %s28, 0
      %p233 = por %p231, %p232
      %p234 = scmp.le.s32.totalorder 1, %s22
      %p235 = scmp.lt.s32.totalorder %s22, 3
      %p236 = pnand %p234, %p235
      %p237 = pneg %p236
      // Predicated region
      $region9: #{tpu_custom_call.1} parent=5 // pred_check
        _
      $region10: #{tpu_custom_call.1} parent=5 // pred_check_branch
        %239 = sbr.rel (%p236) target = $region12
      $region11: #{tpu_custom_call.1} parent=5 // pred_region
        %s240 = ssub.s32 %s22, 1
        // Predicated region
        $region13: #{tpu_custom_call.1} parent=11 // pred_check
          %p241 = pneg %p69
        $region14: #{tpu_custom_call.1} parent=11 // pred_check_branch
          %243 = sbr.rel (%p241) target = $region16
        $region15: #{tpu_custom_call.1} parent=11 // pred_region
          %245 = vsyncadd [#allocation6], 0
          %s247 = sshll.u32 %s1, 4
          %s248 = int_to_ptr.hbm [resolvable:$true] %s247
          %s249 = sshll.u32 [#allocation5], 4
          %s250 = int_to_ptr.vmem [resolvable:$true] %s249
          %252 = dma.hbm_to_vmem [thread:$0]  %s248, 16, %s250, [#allocation6]
        $region16: #{tpu_custom_call.1} parent=11 // pred_fallthru
          _
        // Predicated region
        $region17: #{tpu_custom_call.1} parent=11 // pred_check
          %p253 = pneg %p90
        $region18: #{tpu_custom_call.1} parent=11 // pred_check_branch
          %255 = sbr.rel (%p253) target = $region20
        $region19: #{tpu_custom_call.1} parent=11 // pred_region
          _
        $region20: #{tpu_custom_call.1} parent=11 // pred_fallthru
          _
        // Predicated region
        $region21: #{tpu_custom_call.1} parent=11 // pred_check
          %p256 = pneg %p111
        $region22: #{tpu_custom_call.1} parent=11 // pred_check_branch
          %258 = sbr.rel (%p256) target = $region24
        $region23: #{tpu_custom_call.1} parent=11 // pred_region
          %260 = vsyncadd [#allocation6], 0
          %s261 = sshll.u32 %s3, 4
          %s262 = int_to_ptr.hbm [resolvable:$true] %s261
          %s263 = sshll.u32 [#allocation7], 4
          %s264 = int_to_ptr.vmem [resolvable:$true] %s263
          %269 = dma.hbm_to_vmem [thread:$0]  %s262, 512, %s264, [#allocation6], 128, 128, 8
        $region24: #{tpu_custom_call.1} parent=11 // pred_fallthru
          _
        // Predicated region
        $region25: #{tpu_custom_call.1} parent=11 // pred_check
          %p270 = pneg %p132
        $region26: #{tpu_custom_call.1} parent=11 // pred_check_branch
          %272 = sbr.rel (%p270) target = $region28
        $region27: #{tpu_custom_call.1} parent=11 // pred_region
          _
        $region28: #{tpu_custom_call.1} parent=11 // pred_fallthru
          _
        // Predicated region
        $region29: #{tpu_custom_call.1} parent=11 // pred_check
          %p273 = pneg %p153
        $region30: #{tpu_custom_call.1} parent=11 // pred_check_branch
          %275 = sbr.rel (%p273) target = $region32
        $region31: #{tpu_custom_call.1} parent=11 // pred_region
          %277 = vsyncadd [#allocation9], 0
          %s278 = sshll.u32 %s5, 4
          %s279 = int_to_ptr.hbm [resolvable:$true] %s278
          %s280 = sshll.u32 [#allocation8], 4
          %s281 = int_to_ptr.vmem [resolvable:$true] %s280
          %286 = dma.hbm_to_vmem [thread:$0]  %s279, 512, %s281, [#allocation9], 128, 128, 8
        $region32: #{tpu_custom_call.1} parent=11 // pred_fallthru
          _
        // Predicated region
        $region33: #{tpu_custom_call.1} parent=11 // pred_check
          %p287 = pneg %p174
        $region34: #{tpu_custom_call.1} parent=11 // pred_check_branch
          %289 = sbr.rel (%p287) target = $region36
        $region35: #{tpu_custom_call.1} parent=11 // pred_region
          _
        $region36: #{tpu_custom_call.1} parent=11 // pred_fallthru
          _
      $region12: #{tpu_custom_call.1} parent=5 // pred_fallthru
        _
      %p290 = scmp.lt.s32.totalorder %s22, 2
      // Predicated region
      $region37: #{tpu_custom_call.1} parent=5 // pred_check
        %p291 = pneg %p290
      $region38: #{tpu_custom_call.1} parent=5 // pred_check_branch
        %293 = sbr.rel (%p291) target = $region40
      $region39: #{tpu_custom_call.1} parent=5 // pred_region
        // Predicated region
        $region41: #{tpu_custom_call.1} parent=39 // pred_check
          %p294 = pneg %p42
        $region42: #{tpu_custom_call.1} parent=39 // pred_check_branch
          %296 = sbr.rel (%p294) target = $region44
        $region43: #{tpu_custom_call.1} parent=39 // pred_region
          %s297 = sand.u32 %s22, 1
          %s298 = scalar_lea.sflag [#allocation3], %s297
          %s299 = sand.u32 %s32, 1
          %s300 = smul.addr %s299, 8
          %s301 = scalar_lea.vmem [#allocation2], %s300
          %303 = vsyncadd %s298, 0
          %s304 = smul.addr %s22, 8
          %s305 = scalar_lea.hbm %s0, %s304
          %s307 = sshll.u32 %s305, 4
          %s308 = int_to_ptr.hbm [resolvable:$true] %s307
          %s309 = sshll.u32 %s301, 4
          %s310 = int_to_ptr.vmem [resolvable:$true] %s309
          %312 = dma.hbm_to_vmem [thread:$0]  %s308, 128, %s310, %s298
        $region44: #{tpu_custom_call.1} parent=39 // pred_fallthru
          _
        // Predicated region
        $region45: #{tpu_custom_call.1} parent=39 // pred_check
          %p313 = pneg %p194
        $region46: #{tpu_custom_call.1} parent=39 // pred_check_branch
          %315 = sbr.rel (%p313) target = $region48
        $region47: #{tpu_custom_call.1} parent=39 // pred_region
          %s316 = sand.u32 %s22, 1
          %s317 = scalar_lea.sflag [#allocation3], %s316
          %s318 = sand.u32 %s184, 1
          %s319 = smul.addr %s318, 8
          %s320 = scalar_lea.vmem [#allocation10], %s319
          %322 = vsyncadd %s317, 0
          %s323 = smul.addr %s22, 8
          %s324 = scalar_lea.hbm %s7, %s323
          %s326 = sshll.u32 %s324, 4
          %s327 = int_to_ptr.hbm [resolvable:$true] %s326
          %s328 = sshll.u32 %s320, 4
          %s329 = int_to_ptr.vmem [resolvable:$true] %s328
          %331 = dma.hbm_to_vmem [thread:$0]  %s327, 128, %s329, %s317
        $region48: #{tpu_custom_call.1} parent=39 // pred_fallthru
          _
      $region40: #{tpu_custom_call.1} parent=5 // pred_fallthru
        _
      %p332 = scmp.le.s32.totalorder 1, %s22
      %p333 = scmp.lt.s32.totalorder %s22, 3
      %p334 = pnand %p332, %p333
      %p335 = pneg %p334
      // Predicated region
      $region49: #{tpu_custom_call.1} parent=5 // pred_check
        _
      $region50: #{tpu_custom_call.1} parent=5 // pred_check_branch
        %337 = sbr.rel (%p334) target = $region52
      $region51: #{tpu_custom_call.1} parent=5 // pred_region
        %s338 = ssub.s32 %s22, 1
        %s339 = sand.u32 %s27, 1
        %s340 = scalar_lea.sflag [#allocation3], %s339
        %s341 = sand.u32 %s35, 1
        %s342 = smul.addr %s341, 8
        %s343 = scalar_lea.vmem [#allocation2], %s342
        // Predicated region
        $region53: #{tpu_custom_call.1} parent=51 // pred_check
          %p344 = pneg %p48
        $region54: #{tpu_custom_call.1} parent=51 // pred_check_branch
          %346 = sbr.rel (%p344) target = $region56
        $region55: #{tpu_custom_call.1} parent=51 // pred_region
          %348 = dma.done %s340, 128
        $region56: #{tpu_custom_call.1} parent=51 // pred_fallthru
          _
        // Predicated region
        $region57: #{tpu_custom_call.1} parent=51 // pred_check
          %p349 = pneg %p69
        $region58: #{tpu_custom_call.1} parent=51 // pred_check_branch
          %351 = sbr.rel (%p349) target = $region60
        $region59: #{tpu_custom_call.1} parent=51 // pred_region
          %353 = dma.done [#allocation6], 16
        $region60: #{tpu_custom_call.1} parent=51 // pred_fallthru
          _
        // Predicated region
        $region61: #{tpu_custom_call.1} parent=51 // pred_check
          %p354 = pneg %p111
        $region62: #{tpu_custom_call.1} parent=51 // pred_check_branch
          %356 = sbr.rel (%p354) target = $region64
        $region63: #{tpu_custom_call.1} parent=51 // pred_region
          %358 = dma.done [#allocation6], 512
        $region64: #{tpu_custom_call.1} parent=51 // pred_fallthru
          _
        // Predicated region
        $region65: #{tpu_custom_call.1} parent=51 // pred_check
          %p359 = pneg %p153
        $region66: #{tpu_custom_call.1} parent=51 // pred_check_branch
          %361 = sbr.rel (%p359) target = $region68
        $region67: #{tpu_custom_call.1} parent=51 // pred_region
          %363 = dma.done [#allocation9], 512
        $region68: #{tpu_custom_call.1} parent=51 // pred_fallthru
          _
        %s364 = sand.u32 %s27, 1
        %s365 = scalar_lea.sflag [#allocation3], %s364
        %s366 = sand.u32 %s187, 1
        %s367 = smul.addr %s366, 8
        %s368 = scalar_lea.vmem [#allocation10], %s367
        // Predicated region
        $region69: #{tpu_custom_call.1} parent=51 // pred_check
          %p369 = pneg %p200
        $region70: #{tpu_custom_call.1} parent=51 // pred_check_branch
          %371 = sbr.rel (%p369) target = $region72
        $region71: #{tpu_custom_call.1} parent=51 // pred_region
          %373 = dma.done %s365, 128
        $region72: #{tpu_custom_call.1} parent=51 // pred_fallthru
          _
        %s374 = sand.u32 %s27, 1
        %s375 = scalar_lea.sflag [#allocation3], %s374
        %s376 = sand.u32 %s35, 1
        %s377 = smul.addr %s376, 8
        %s378 = scalar_lea.vmem [#allocation2], %s377
        %p379 = pneg %p48
        %p380 = pneg %p45
        %p381 = pneg %p69
        %p382 = pneg %p66
        %p383 = pneg %p90
        %p384 = pneg %p87
        %p385 = pneg %p111
        %p386 = pneg %p108
        %p387 = pneg %p132
        %p388 = pneg %p129
        %p389 = pneg %p153
        %p390 = pneg %p150
        %p391 = pneg %p174
        %p392 = pneg %p171
        %s393 = sand.u32 %s27, 1
        %s394 = scalar_lea.sflag [#allocation3], %s393
        %s395 = sand.u32 %s187, 1
        %s396 = smul.addr %s395, 8
        %s397 = scalar_lea.vmem [#allocation10], %s396
        %p398 = pneg %p200
        %p399 = pneg %p197
        %p400 = pneg %p226
        %p401 = pneg %p223
        %s402 = sand.u32 %s213, 1
        %s403 = scalar_lea.sflag [#allocation4], %s402
        %s404 = sand.u32 %s213, 1
        %s405 = smul.addr %s404, 8
        %s406 = scalar_lea.vmem [#allocation11], %s405
        %v407 = vld [vmem:[%s343] sm:$0xff]
        %v408 = vld [vmem:[#allocation5] sm:$0x1]
        %v409 = vld [vmem:[%s2] sm:$0x1]
        %vm410 = vcmask 261120
        %v411 = vsel %vm410, %v407, 0.0
        %412 = vadd.xlane.f32.xlu0 %v411
        %v413 = vpop.xlane.xlu0 %412
        %v414 = vrcp.pop 32.0
        %v415 = vmul.f32 32.0, %v414
        %v416 = vsub.f32 1.0, %v415
        %v417 = vmul.f32 %v414, %v416
        %v418 = vadd.f32 %v414, %v417
        %vm419 = vweird.f32 %v414
        %v420 = vsel %vm419, %v414, %v418
        %v421 = vmul.f32 %v413, %v420
        %v422 = vsub.f32 %v407, %v421
        %v423 = vmul.f32 %v422, %v422
        %v424 = vsel %vm410, %v423, 0.0
        %425 = vadd.xlane.f32.xlu0 %v424
        %v426 = vpop.xlane.xlu0 %425
        %v427 = vmul.f32 %v426, 0.032258064
        %v428 = vrsqrt.pop %v427
        %v429 = vmul.f32 %v428, %v427
        %v430 = vmul.f32 %v429, %v428
        %v431 = vmul.f32 0.5, %v430
        %v432 = vsub.f32 1.5, %v431
        %v433 = vmul.f32 %v428, %v432
        %v434 = vmul.f32 %v427, %v433
        %vm435 = vcmp.eq.f32.partialorder %v427, inf
        %v436 = vsel %vm435, %v427, %v434
        %vm437 = vcmp.eq.f32.partialorder %v427, 0.0
        %v438 = vand.u32 %v427, 2147483648
        %v439 = vsel %vm437, %v438, %v436
        %v441 = vperm.slane %v408, 0
        %v443 = vmul.f32 %v441, %v422
        %v444 = vadd.f32 %v439, 1e-06
        %v445 = vrcp.pop %v444
        %v446 = vmul.f32 %v444, %v445
        %v447 = vsub.f32 1.0, %v446
        %v448 = vmul.f32 %v445, %v447
        %v449 = vadd.f32 %v445, %v448
        %vm450 = vweird.f32 %v444
        %vm451 = vweird.f32 %v445
        %vm452 = vmor %vm450, %vm451
        %v453 = vsel %vm452, %v445, %v449
        %v454 = vand.u32 2147483647, %v444
        %vm455 = vcmp.eq.f32.partialorder %v454, 8.507059e+37
        %v456 = vand.u32 %v444, 2147483648
        %v457 = vor.u32 1.1754944e-38, %v456
        %v458 = vsel %vm455, %v457, %v453
        %v459 = vmul.f32 %v443, %v458
        %v461 = vperm.slane %v409, 0
        %v463 = vadd.f32 %v459, %v461
        %v464 = vld [vmem:[#allocation7] sm:$0xff]
        %v465 = vld [vmem:[#allocation7 + $0x8] sm:$0xff]
        %v466 = vld [vmem:[#allocation7 + $0x10] sm:$0xff]
        %v467 = vld [vmem:[#allocation7 + $0x18] sm:$0xff]
        %v468 = vld [vmem:[%s4] sm:$0x1]
        %v470 = vperm.slane %v468, 0
        %v473 = vsel %vm410, %v463, 0
        %475 = vmatpush.msra.mxu0 0.0
        %476 = vmatpush.msra.mxu0 0.0
        %477 = vmatpush.msra.mxu0 0.0
        %478 = vmatpush.msra.mxu0 0.0
        %479 = vmatpush.msra.mxu0 0.0
        %480 = vmatpush.msra.mxu0 0.0
        %481 = vmatpush.msra.mxu0 0.0
        %482 = vmatpush.msra.mxu0 0.0
        %483 = vmatpush.msra.mxu0 0.0
        %484 = vmatpush.msra.mxu0 0.0
        %485 = vmatpush.msra.mxu0 0.0
        %486 = vmatpush.msra.mxu0 0.0
        %487 = vmatpush.msra.mxu0 %v467
        %488 = vmatpush.msra.mxu0 %v466
        %489 = vmatpush.msra.mxu0 %v465
        %490 = vmatpush.msra.mxu0 %v464
        %491 = vmatmul.f32.gmra.mxu0 %v473
        %v492 = vpop.f32.mrf.mxu0
        %v493 = vadd.f32 %v470, %v492
        %494 = vdwg.mxu0
        %v495 = vld [vmem:[%s368] sm:$0xff]
        %497 = vrot.lane.b32.xlu0 %v493, 96
        %v498 = vpop.permute.xlu0 %497
        %vm499 = vcmask 64512
        %v500 = vsel %vm499, %v493, 0
        %v502 = vsel %vm499, %v498, 0
        %504 = vmatpush.xpose.msra.mxu0 0.0
        %505 = vmatpush.xpose.msra.mxu0 0.0
        %506 = vmatpush.xpose.msra.mxu0 0.0
        %507 = vmatpush.xpose.msra.mxu0 0.0
        %508 = vmatpush.xpose.msra.mxu0 0.0
        %509 = vmatpush.xpose.msra.mxu0 0.0
        %510 = vmatpush.xpose.msra.mxu0 0.0
        %511 = vmatpush.xpose.msra.mxu0 0.0
        %512 = vmatpush.xpose.msra.mxu0 0.0
        %513 = vmatpush.xpose.msra.mxu0 0.0
        %514 = vmatpush.xpose.msra.mxu0 0.0
        %515 = vmatpush.xpose.msra.mxu0 0.0
        %516 = vmatpush.xpose.msra.mxu0 0.0
        %517 = vmatpush.xpose.msra.mxu0 0.0
        %518 = vmatpush.xpose.msra.mxu0 0.0
        %519 = vmatpush.xpose.msra.mxu0 %v502
        %520 = vmatmul.f32.gmra.mxu0 %v500
        %v521 = vpop.f32.mrf.mxu0
        %v522 = vadd.f32 0.0, %v521
        %523 = vdwg.mxu0
        %v524 = vmul.f32 %v522, 0.35355338
        %v525 = vadd.f32 %v524, %v495
        %v526 = vsel %vm499, %v525, -inf
        %527 = vmax.xlane.f32.xlu0 %v526
        %v528 = vpop.xlane.xlu0 %527
        %v529 = vsub.f32 %v525, %v528
        %v530 = vmul.f32 %v529, 1.442695
        %v531 = vpow.pop %v530
        %v532 = vsel %vm499, %v531, 0.0
        %533 = vadd.xlane.f32.xlu0 %v532
        %v534 = vpop.xlane.xlu0 %533
        %v535 = vrcp.pop %v534
        %v536 = vmul.f32 %v534, %v535
        %v537 = vsub.f32 1.0, %v536
        %v538 = vmul.f32 %v535, %v537
        %v539 = vadd.f32 %v535, %v538
        %vm540 = vweird.f32 %v534
        %vm541 = vweird.f32 %v535
        %vm542 = vmor %vm540, %vm541
        %v543 = vsel %vm542, %v535, %v539
        %v544 = vand.u32 2147483647, %v534
        %vm545 = vcmp.eq.f32.partialorder %v544, 8.507059e+37
        %v546 = vand.u32 %v534, 2147483648
        %v547 = vor.u32 1.1754944e-38, %v546
        %v548 = vsel %vm545, %v547, %v543
        %v549 = vmul.f32 %v531, %v548
        %550 = vrot.lane.b32.xlu0 %v493, 64
        %v551 = vpop.permute.xlu0 %550
        %v554 = vsel %vm499, %v549, 0
        %556 = vmatpush.msra.mxu0 0.0
        %557 = vmatpush.msra.mxu0 0.0
        %558 = vmatpush.msra.mxu0 0.0
        %559 = vmatpush.msra.mxu0 0.0
        %560 = vmatpush.msra.mxu0 0.0
        %561 = vmatpush.msra.mxu0 0.0
        %562 = vmatpush.msra.mxu0 0.0
        %563 = vmatpush.msra.mxu0 0.0
        %564 = vmatpush.msra.mxu0 0.0
        %565 = vmatpush.msra.mxu0 0.0
        %566 = vmatpush.msra.mxu0 0.0
        %567 = vmatpush.msra.mxu0 0.0
        %568 = vmatpush.msra.mxu0 0.0
        %569 = vmatpush.msra.mxu0 0.0
        %570 = vmatpush.msra.mxu0 0.0
        %571 = vmatpush.msra.mxu0 %v551
        %572 = vmatmul.f32.gmra.mxu0 %v554
        %v573 = vpop.f32.mrf.mxu0
        %v574 = vadd.f32 0.0, %v573
        %575 = vdwg.mxu0
        %576 = vrot.lane.b32.xlu0 %v493, 120
        %v577 = vpop.permute.xlu0 %576
        %578 = vrot.lane.b32.xlu0 %v493, 88
        %v579 = vpop.permute.xlu0 %578
        %v580 = vsel %vm499, %v577, 0
        %v582 = vsel %vm499, %v579, 0
        %584 = vmatpush.xpose.msra.mxu0 0.0
        %585 = vmatpush.xpose.msra.mxu0 0.0
        %586 = vmatpush.xpose.msra.mxu0 0.0
        %587 = vmatpush.xpose.msra.mxu0 0.0
        %588 = vmatpush.xpose.msra.mxu0 0.0
        %589 = vmatpush.xpose.msra.mxu0 0.0
        %590 = vmatpush.xpose.msra.mxu0 0.0
        %591 = vmatpush.xpose.msra.mxu0 0.0
        %592 = vmatpush.xpose.msra.mxu0 0.0
        %593 = vmatpush.xpose.msra.mxu0 0.0
        %594 = vmatpush.xpose.msra.mxu0 0.0
        %595 = vmatpush.xpose.msra.mxu0 0.0
        %596 = vmatpush.xpose.msra.mxu0 0.0
        %597 = vmatpush.xpose.msra.mxu0 0.0
        %598 = vmatpush.xpose.msra.mxu0 0.0
        %599 = vmatpush.xpose.msra.mxu0 %v582
        %600 = vmatmul.f32.gmra.mxu0 %v580
        %v601 = vpop.f32.mrf.mxu0
        %v602 = vadd.f32 0.0, %v601
        %603 = vdwg.mxu0
        %v604 = vmul.f32 %v602, 0.35355338
        %v605 = vadd.f32 %v604, %v495
        %v606 = vsel %vm499, %v605, -inf
        %607 = vmax.xlane.f32.xlu0 %v606
        %v608 = vpop.xlane.xlu0 %607
        %v609 = vsub.f32 %v605, %v608
        %v610 = vmul.f32 %v609, 1.442695
        %v611 = vpow.pop %v610
        %v612 = vsel %vm499, %v611, 0.0
        %613 = vadd.xlane.f32.xlu0 %v612
        %v614 = vpop.xlane.xlu0 %613
        %v615 = vrcp.pop %v614
        %v616 = vmul.f32 %v614, %v615
        %v617 = vsub.f32 1.0, %v616
        %v618 = vmul.f32 %v615, %v617
        %v619 = vadd.f32 %v615, %v618
        %vm620 = vweird.f32 %v614
        %vm621 = vweird.f32 %v615
        %vm622 = vmor %vm620, %vm621
        %v623 = vsel %vm622, %v615, %v619
        %v624 = vand.u32 2147483647, %v614
        %vm625 = vcmp.eq.f32.partialorder %v624, 8.507059e+37
        %v626 = vand.u32 %v614, 2147483648
        %v627 = vor.u32 1.1754944e-38, %v626
        %v628 = vsel %vm625, %v627, %v623
        %v629 = vmul.f32 %v611, %v628
        %630 = vrot.lane.b32.xlu0 %v493, 56
        %v631 = vpop.permute.xlu0 %630
        %v634 = vsel %vm499, %v629, 0
        %636 = vmatpush.msra.mxu0 0.0
        %637 = vmatpush.msra.mxu0 0.0
        %638 = vmatpush.msra.mxu0 0.0
        %639 = vmatpush.msra.mxu0 0.0
        %640 = vmatpush.msra.mxu0 0.0
        %641 = vmatpush.msra.mxu0 0.0
        %642 = vmatpush.msra.mxu0 0.0
        %643 = vmatpush.msra.mxu0 0.0
        %644 = vmatpush.msra.mxu0 0.0
        %645 = vmatpush.msra.mxu0 0.0
        %646 = vmatpush.msra.mxu0 0.0
        %647 = vmatpush.msra.mxu0 0.0
        %648 = vmatpush.msra.mxu0 0.0
        %649 = vmatpush.msra.mxu0 0.0
        %650 = vmatpush.msra.mxu0 0.0
        %651 = vmatpush.msra.mxu0 %v631
        %652 = vmatmul.f32.gmra.mxu0 %v634
        %v653 = vpop.f32.mrf.mxu0
        %v654 = vadd.f32 0.0, %v653
        %655 = vdwg.mxu0
        %656 = vrot.lane.b32.xlu0 %v493, 112
        %v657 = vpop.permute.xlu0 %656
        %658 = vrot.lane.b32.xlu0 %v493, 80
        %v659 = vpop.permute.xlu0 %658
        %v660 = vsel %vm499, %v657, 0
        %v662 = vsel %vm499, %v659, 0
        %664 = vmatpush.xpose.msra.mxu0 0.0
        %665 = vmatpush.xpose.msra.mxu0 0.0
        %666 = vmatpush.xpose.msra.mxu0 0.0
        %667 = vmatpush.xpose.msra.mxu0 0.0
        %668 = vmatpush.xpose.msra.mxu0 0.0
        %669 = vmatpush.xpose.msra.mxu0 0.0
        %670 = vmatpush.xpose.msra.mxu0 0.0
        %671 = vmatpush.xpose.msra.mxu0 0.0
        %672 = vmatpush.xpose.msra.mxu0 0.0
        %673 = vmatpush.xpose.msra.mxu0 0.0
        %674 = vmatpush.xpose.msra.mxu0 0.0
        %675 = vmatpush.xpose.msra.mxu0 0.0
        %676 = vmatpush.xpose.msra.mxu0 0.0
        %677 = vmatpush.xpose.msra.mxu0 0.0
        %678 = vmatpush.xpose.msra.mxu0 0.0
        %679 = vmatpush.xpose.msra.mxu0 %v662
        %680 = vmatmul.f32.gmra.mxu0 %v660
        %v681 = vpop.f32.mrf.mxu0
        %v682 = vadd.f32 0.0, %v681
        %683 = vdwg.mxu0
        %v684 = vmul.f32 %v682, 0.35355338
        %v685 = vadd.f32 %v684, %v495
        %v686 = vsel %vm499, %v685, -inf
        %687 = vmax.xlane.f32.xlu0 %v686
        %v688 = vpop.xlane.xlu0 %687
        %v689 = vsub.f32 %v685, %v688
        %v690 = vmul.f32 %v689, 1.442695
        %v691 = vpow.pop %v690
        %v692 = vsel %vm499, %v691, 0.0
        %693 = vadd.xlane.f32.xlu0 %v692
        %v694 = vpop.xlane.xlu0 %693
        %v695 = vrcp.pop %v694
        %v696 = vmul.f32 %v694, %v695
        %v697 = vsub.f32 1.0, %v696
        %v698 = vmul.f32 %v695, %v697
        %v699 = vadd.f32 %v695, %v698
        %vm700 = vweird.f32 %v694
        %vm701 = vweird.f32 %v695
        %vm702 = vmor %vm700, %vm701
        %v703 = vsel %vm702, %v695, %v699
        %v704 = vand.u32 2147483647, %v694
        %vm705 = vcmp.eq.f32.partialorder %v704, 8.507059e+37
        %v706 = vand.u32 %v694, 2147483648
        %v707 = vor.u32 1.1754944e-38, %v706
        %v708 = vsel %vm705, %v707, %v703
        %v709 = vmul.f32 %v691, %v708
        %710 = vrot.lane.b32.xlu0 %v493, 48
        %v711 = vpop.permute.xlu0 %710
        %v714 = vsel %vm499, %v709, 0
        %716 = vmatpush.msra.mxu0 0.0
        %717 = vmatpush.msra.mxu0 0.0
        %718 = vmatpush.msra.mxu0 0.0
        %719 = vmatpush.msra.mxu0 0.0
        %720 = vmatpush.msra.mxu0 0.0
        %721 = vmatpush.msra.mxu0 0.0
        %722 = vmatpush.msra.mxu0 0.0
        %723 = vmatpush.msra.mxu0 0.0
        %724 = vmatpush.msra.mxu0 0.0
        %725 = vmatpush.msra.mxu0 0.0
        %726 = vmatpush.msra.mxu0 0.0
        %727 = vmatpush.msra.mxu0 0.0
        %728 = vmatpush.msra.mxu0 0.0
        %729 = vmatpush.msra.mxu0 0.0
        %730 = vmatpush.msra.mxu0 0.0
        %731 = vmatpush.msra.mxu0 %v711
        %732 = vmatmul.f32.gmra.mxu0 %v714
        %v733 = vpop.f32.mrf.mxu0
        %v734 = vadd.f32 0.0, %v733
        %735 = vdwg.mxu0
        %736 = vrot.lane.b32.xlu0 %v493, 104
        %v737 = vpop.permute.xlu0 %736
        %738 = vrot.lane.b32.xlu0 %v493, 72
        %v739 = vpop.permute.xlu0 %738
        %v740 = vsel %vm499, %v737, 0
        %v742 = vsel %vm499, %v739, 0
        %744 = vmatpush.xpose.msra.mxu0 0.0
        %745 = vmatpush.xpose.msra.mxu0 0.0
        %746 = vmatpush.xpose.msra.mxu0 0.0
        %747 = vmatpush.xpose.msra.mxu0 0.0
        %748 = vmatpush.xpose.msra.mxu0 0.0
        %749 = vmatpush.xpose.msra.mxu0 0.0
        %750 = vmatpush.xpose.msra.mxu0 0.0
        %751 = vmatpush.xpose.msra.mxu0 0.0
        %752 = vmatpush.xpose.msra.mxu0 0.0
        %753 = vmatpush.xpose.msra.mxu0 0.0
        %754 = vmatpush.xpose.msra.mxu0 0.0
        %755 = vmatpush.xpose.msra.mxu0 0.0
        %756 = vmatpush.xpose.msra.mxu0 0.0
        %757 = vmatpush.xpose.msra.mxu0 0.0
        %758 = vmatpush.xpose.msra.mxu0 0.0
        %759 = vmatpush.xpose.msra.mxu0 %v742
        %760 = vmatmul.f32.gmra.mxu0 %v740
        %v761 = vpop.f32.mrf.mxu0
        %v762 = vadd.f32 0.0, %v761
        %763 = vdwg.mxu0
        %v764 = vmul.f32 %v762, 0.35355338
        %v765 = vadd.f32 %v764, %v495
        %v766 = vsel %vm499, %v765, -inf
        %767 = vmax.xlane.f32.xlu0 %v766
        %v768 = vpop.xlane.xlu0 %767
        %v769 = vsub.f32 %v765, %v768
        %v770 = vmul.f32 %v769, 1.442695
        %v771 = vpow.pop %v770
        %v772 = vsel %vm499, %v771, 0.0
        %773 = vadd.xlane.f32.xlu0 %v772
        %v774 = vpop.xlane.xlu0 %773
        %v775 = vrcp.pop %v774
        %v776 = vmul.f32 %v774, %v775
        %v777 = vsub.f32 1.0, %v776
        %v778 = vmul.f32 %v775, %v777
        %v779 = vadd.f32 %v775, %v778
        %vm780 = vweird.f32 %v774
        %vm781 = vweird.f32 %v775
        %vm782 = vmor %vm780, %vm781
        %v783 = vsel %vm782, %v775, %v779
        %v784 = vand.u32 2147483647, %v774
        %vm785 = vcmp.eq.f32.partialorder %v784, 8.507059e+37
        %v786 = vand.u32 %v774, 2147483648
        %v787 = vor.u32 1.1754944e-38, %v786
        %v788 = vsel %vm785, %v787, %v783
        %v789 = vmul.f32 %v771, %v788
        %790 = vrot.lane.b32.xlu0 %v493, 40
        %v791 = vpop.permute.xlu0 %790
        %v794 = vsel %vm499, %v789, 0
        %796 = vmatpush.msra.mxu0 0.0
        %797 = vmatpush.msra.mxu0 0.0
        %798 = vmatpush.msra.mxu0 0.0
        %799 = vmatpush.msra.mxu0 0.0
        %800 = vmatpush.msra.mxu0 0.0
        %801 = vmatpush.msra.mxu0 0.0
        %802 = vmatpush.msra.mxu0 0.0
        %803 = vmatpush.msra.mxu0 0.0
        %804 = vmatpush.msra.mxu0 0.0
        %805 = vmatpush.msra.mxu0 0.0
        %806 = vmatpush.msra.mxu0 0.0
        %807 = vmatpush.msra.mxu0 0.0
        %808 = vmatpush.msra.mxu0 0.0
        %809 = vmatpush.msra.mxu0 0.0
        %810 = vmatpush.msra.mxu0 0.0
        %811 = vmatpush.msra.mxu0 %v791
        %812 = vmatmul.f32.gmra.mxu0 %v794
        %v813 = vpop.f32.mrf.mxu0
        %v814 = vadd.f32 0.0, %v813
        %815 = vdwg.mxu0
        %817 = vrot.lane.b32.xlu0 %v654, 8
        %v818 = vpop.permute.xlu0 %817
        %821 = vrot.lane.b32.xlu0 %v734, 16
        %v822 = vpop.permute.xlu0 %821
        %825 = vrot.lane.b32.xlu0 %v814, 24
        %v826 = vpop.permute.xlu0 %825
        %v828 = vsel %vm499, %v574, %v818
        %vm829 = vcmask 130048
        %v830 = vsel %vm829, %v828, %v822
        %vm831 = vcmask 195584
        %v832 = vsel %vm831, %v830, %v826
        %v833 = vld [vmem:[#allocation8] sm:$0xff]
        %v834 = vld [vmem:[#allocation8 + $0x8] sm:$0xff]
        %v835 = vld [vmem:[#allocation8 + $0x10] sm:$0xff]
        %v836 = vld [vmem:[#allocation8 + $0x18] sm:$0xff]
        %v837 = vld [vmem:[%s6] sm:$0x1]
        %v839 = vperm.slane %v837, 0
        %v842 = vsel %vm410, %v832, 0
        %844 = vmatpush.msra.mxu0 0.0
        %845 = vmatpush.msra.mxu0 0.0
        %846 = vmatpush.msra.mxu0 0.0
        %847 = vmatpush.msra.mxu0 0.0
        %848 = vmatpush.msra.mxu0 0.0
        %849 = vmatpush.msra.mxu0 0.0
        %850 = vmatpush.msra.mxu0 0.0
        %851 = vmatpush.msra.mxu0 0.0
        %852 = vmatpush.msra.mxu0 0.0
        %853 = vmatpush.msra.mxu0 0.0
        %854 = vmatpush.msra.mxu0 0.0
        %855 = vmatpush.msra.mxu0 0.0
        %856 = vmatpush.msra.mxu0 %v836
        %857 = vmatpush.msra.mxu0 %v835
        %858 = vmatpush.msra.mxu0 %v834
        %859 = vmatpush.msra.mxu0 %v833
        %860 = vmatmul.f32.gmra.mxu0 %v842
        %v861 = vpop.f32.mrf.mxu0
        %v862 = vadd.f32 %v839, %v861
        %863 = vdwg.mxu0
        %v864 = vadd.f32 %v407, %v862
        %865 = vst.msk [vmem:[%s406] sm:$0xff] %vm410, %v864
        %s866 = sand.u32 %s213, 1
        %s867 = scalar_lea.sflag [#allocation4], %s866
        %s868 = sand.u32 %s213, 1
        %s869 = smul.addr %s868, 8
        %s870 = scalar_lea.vmem [#allocation11], %s869
        // Predicated region
        $region73: #{tpu_custom_call.1} parent=51 // pred_check
          %p871 = pneg %p223
        $region74: #{tpu_custom_call.1} parent=51 // pred_check_branch
          %873 = sbr.rel (%p871) target = $region76
        $region75: #{tpu_custom_call.1} parent=51 // pred_region
          %875 = vsyncadd %s867, 0
          %s876 = smul.addr %s27, 8
          %s877 = scalar_lea.hbm %s8, %s876
          %s879 = sshll.u32 %s870, 4
          %s880 = int_to_ptr.vmem [resolvable:$true] %s879
          %s881 = sshll.u32 %s877, 4
          %s882 = int_to_ptr.hbm [resolvable:$true] %s881
          %884 = dma.vmem_to_hbm [thread:$0]  %s880, 128, %s882, %s867
        $region76: #{tpu_custom_call.1} parent=51 // pred_fallthru
          _
      $region52: #{tpu_custom_call.1} parent=5 // pred_fallthru
        _
      %p885 = scmp.le.s32.totalorder 2, %s22
      // Predicated region
      $region77: #{tpu_custom_call.1} parent=5 // pred_check
        %p886 = pneg %p885
      $region78: #{tpu_custom_call.1} parent=5 // pred_check_branch
        %888 = sbr.rel (%p886) target = $region80
      $region79: #{tpu_custom_call.1} parent=5 // pred_region
        %s889 = ssub.s32 %s22, 2
        // Predicated region
        $region81: #{tpu_custom_call.1} parent=79 // pred_check
          %p890 = pneg %p229
        $region82: #{tpu_custom_call.1} parent=79 // pred_check_branch
          %892 = sbr.rel (%p890) target = $region84
        $region83: #{tpu_custom_call.1} parent=79 // pred_region
          %s893 = sand.u32 %s214, 1
          %s894 = scalar_lea.sflag [#allocation4], %s893
          %s895 = sand.u32 %s214, 1
          %s896 = smul.addr %s895, 8
          %s897 = scalar_lea.vmem [#allocation11], %s896
          %899 = dma.done %s894, 128
        $region84: #{tpu_custom_call.1} parent=79 // pred_fallthru
          _
      $region80: #{tpu_custom_call.1} parent=5 // pred_fallthru
        _
    $region6: #{tpu_custom_call.1} parent=1 // loop_footer
      %s26 = sadd.s32 1, %s22
    $region7: #{tpu_custom_call.1} parent=1 // loop_footer_branch
      %21 = sbr.rel target = $region3
    $region8: #{tpu_custom_call.1} parent=1 // loop_exit
      _
    %900 = vsyncpa [#allocation3], 1
    %s901 = scalar_lea.sflag [#allocation3], 1
    %902 = vsyncpa %s901, 1
    %903 = vsyncpa [#allocation6], 1
    %904 = vsyncpa [#allocation9], 1
    %905 = vsyncpa [#allocation4], 1
    %s906 = scalar_lea.sflag [#allocation4], 1
    %907 = vsyncpa %s906, 1

</llo_original>
